<compile_context>
chip_gen: v5e
topology: v5e:2x2
jax: 0.10.0
libtpu: 0.0.40
codegen_flags: <defaults>
</compile_context>

<pallas_src>
import jax
import jax.numpy as jnp
from jax.experimental import pallas as pl
from jax.experimental.pallas import tpu as pltpu


def _round_up(x, m):
    return ((x + m - 1) // m) * m


def _kernel(sel_ref, pred_ref, out_ref):
    """sel_ref: (TR,128) f32, pred_ref: (TR,128) native dtype, out_ref: (1,8,128) f32."""
    p = pred_ref[...].astype(jnp.float32)
    p = jnp.clip(p, 1e-6, 1.0 - 1e-6)
    contrib = sel_ref[...] * (1.0 - p)                       # (TR, 128) f32
    tr = contrib.shape[0]
    # Tile-aligned regroup (rows 8k..8k+7 -> one (8,128) tile): free reshape, then the
    # reduction over axis 0 is plain elementwise VPU adds into an (8,128) partial.
    out_ref[0] = jnp.sum(contrib.reshape(tr // 8, 8, 128), axis=0)


def _choose_rows(r_needed, pred_itemsize, block_rows):
    """Pick the flat-row tile size using exact padded VMEM bytes."""
    if block_rows is not None:
        tr = max(32, _round_up(int(block_rows), 32))
        return min(tr, _round_up(r_needed, 32))
    # Exact per-row footprint: 128 lanes of y_pred (native dtype) + 128 lanes of sel (f32).
    row_bytes = 128 * (int(pred_itemsize) + 4)
    budget = 8 << 20                       # streaming buffers: <= 8 MiB double-buffered,
    max_rows = (budget // (2 * row_bytes)) // 32 * 32   # far under 32 MiB scoped / 64 MiB v7x
    max_rows = max(32, min(max_rows, 4096))             # diminishing returns beyond ~2-4k rows
    return min(max_rows, _round_up(r_needed, 32))


def active_contour_loss(y_true, y_pred, class_weight, *, block_rows=None):
    """y_true: (B,) or (B,1) int; y_pred: (B, C) float (any dtype); class_weight: (C,) float."""
    B, C = y_pred.shape
    y_true = y_true.reshape(B).astype(jnp.int32)
    cw = class_weight.astype(jnp.float32).reshape(1, C)

    # Selection weights (== scatter one-hot * class_weight), flattened lane-dense.
    sel = (jax.nn.one_hot(y_true, C, dtype=jnp.float32) * cw).reshape(-1)   # (B*C,) f32
    pred = y_pred.reshape(-1)                                               # (B*C,) native dtype

    flat_len = B * C
    r_needed = pl.cdiv(flat_len, 128)
    tr = _choose_rows(r_needed, jnp.dtype(y_pred.dtype).itemsize, block_rows)
    num_tiles = pl.cdiv(r_needed, tr)
    r_padded = num_tiles * tr
    pad = r_padded * 128 - flat_len
    if pad:
        sel = jnp.pad(sel, (0, pad))        # zeros -> padded elements contribute 0
        pred = jnp.pad(pred, (0, pad))
    sel = sel.reshape(r_padded, 128)
    pred = pred.reshape(r_padded, 128)

    partials = pl.pallas_call(
        _kernel,
        out_shape=jax.ShapeDtypeStruct((num_tiles, 8, 128), jnp.float32),
        grid=(num_tiles,),
        in_specs=[
            pl.BlockSpec((tr, 128), lambda i: (i, 0)),   # sel tile (f32)
            pl.BlockSpec((tr, 128), lambda i: (i, 0)),   # y_pred tile (native dtype)
        ],
        out_specs=pl.BlockSpec((1, 8, 128), lambda i: (i, 0, 0)),
        compiler_params=pltpu.CompilerParams(
            dimension_semantics=("parallel",),           # independent tiles -> megacore on v7x
            vmem_limit_bytes=32 * 1024 * 1024,
        ),
    )(sel, pred)

    total = jnp.sum(partials)                            # tiny wrapper-side tree reduce
    denom = jnp.sum(cw) * jnp.float32(B)                 # hoisted out of the kernel
    return total / denom


def _reference(y_true, y_pred, class_weight):
    B, C = y_pred.shape
    onehot = jax.nn.one_hot(y_true.reshape(B), C, dtype=jnp.float32)
    y_pred_c = jnp.clip(y_pred.astype(jnp.float32), 1e-6, 1.0 - 1e-6)
    loss = onehot * (1.0 - y_pred_c) * class_weight.reshape(1, C).astype(jnp.float32)
    return jnp.sum(loss) / (jnp.sum(class_weight.astype(jnp.float32)) * B)


if __name__ == "__main__":
    key = jax.random.PRNGKey(0)
    k1, k2, k3, k4 = jax.random.split(key, 4)

    # Deterministic class weights (stands in for the module's __init__ class_weight list).
    class_weight = jnp.array([1.0, 2.0, 0.5, 1.5], dtype=jnp.float32)

    # Primary shape implied by the module: batch=8, num_classes=4.
    B, C = 8, 4
    y_true = jax.random.randint(k1, (B, 1), 0, C, dtype=jnp.int32)
    y_pred = jax.random.uniform(k2, (B, C), dtype=jnp.float32)

    out = jax.block_until_ready(active_contour_loss(y_true, y_pred, class_weight))
    ref = _reference(y_true, y_pred, class_weight)
    assert jnp.allclose(out, ref, rtol=1e-5, atol=1e-6), (out, ref)

    # Second check: multi-tile grid (forced small block), bf16 input, padded tail.
    B2, C2 = 200, 64
    cw2 = jnp.linspace(0.25, 2.0, C2, dtype=jnp.float32)
    y_true2 = jax.random.randint(k3, (B2, 1), 0, C2, dtype=jnp.int32)
    y_pred2 = jax.random.uniform(k4, (B2, C2), dtype=jnp.float32).astype(jnp.bfloat16)
    out2 = jax.block_until_ready(
        active_contour_loss(y_true2, y_pred2, cw2, block_rows=32))
    ref2 = _reference(y_true2, y_pred2, cw2)
    assert jnp.allclose(out2, ref2, rtol=1e-5, atol=1e-6), (out2, ref2)

    print("KERNEL_OK")
</pallas_src>

<mosaic_0001>
module attributes {stable_mosaic.version = 11 : i64} {
  func.func @_kernel(%arg0: i32, %arg1: memref<32x128xf32, #tpu.memory_space<vmem>>, %arg2: memref<32x128xf32, #tpu.memory_space<vmem>>, %arg3: memref<1x8x128xf32, #tpu.memory_space<vmem>>) attributes {dimension_semantics = [#tpu.dimension_semantics<parallel>], iteration_bounds = array<i64: 1>, scalar_prefetch = 0 : i64, scratch_operands = 0 : i64, tpu.core_type = #tpu.core_type<tc>, window_params = [{transform_indices = @transform_0, window_bounds = array<i64: 32, 128>}, {transform_indices = @transform_1, window_bounds = array<i64: 32, 128>}, {transform_indices = @transform_2, window_bounds = array<i64: 1, 8, 128>}]} {
    %c0 = arith.constant 0 : index
    %c0_0 = arith.constant 0 : index
    %0 = vector.load %arg2[%c0, %c0_0] : memref<32x128xf32, #tpu.memory_space<vmem>>, vector<32x128xf32>
    %cst = arith.constant 9.99999997E-7 : f32
    %cst_1 = arith.constant 0.999998986 : f32
    %1 = vector.broadcast %cst : f32 to vector<32x128xf32>
    %2 = arith.maximumf %1, %0 : vector<32x128xf32>
    %3 = vector.broadcast %cst_1 : f32 to vector<32x128xf32>
    %4 = arith.minimumf %3, %2 : vector<32x128xf32>
    %c0_2 = arith.constant 0 : index
    %c0_3 = arith.constant 0 : index
    %5 = vector.load %arg1[%c0_2, %c0_3] : memref<32x128xf32, #tpu.memory_space<vmem>>, vector<32x128xf32>
    %cst_4 = arith.constant 1.000000e+00 : f32
    %6 = vector.broadcast %cst_4 : f32 to vector<32x128xf32>
    %7 = arith.subf %6, %4 : vector<32x128xf32>
    %8 = arith.mulf %5, %7 : vector<32x128xf32>
    %9 = vector.shape_cast %8 : vector<32x128xf32> to vector<4x8x128xf32>
    %cst_5 = arith.constant dense<0.000000e+00> : vector<8x128xf32>
    %10 = vector.multi_reduction <add>, %9, %cst_5 [0] : vector<4x8x128xf32> to vector<8x128xf32>
    %c0_6 = arith.constant 0 : index
    %c0_7 = arith.constant 0 : index
    %c0_8 = arith.constant 0 : index
    %11 = vector.load %arg3[%c0_6, %c0_7, %c0_8] : memref<1x8x128xf32, #tpu.memory_space<vmem>>, vector<1x8x128xf32>
    %12 = vector.shape_cast %11 : vector<1x8x128xf32> to vector<8x128xf32>
    %13 = vector.shape_cast %10 : vector<8x128xf32> to vector<1x8x128xf32>
    tpu.vector_store %arg3[%c0_6, %c0_7, %c0_8], %13 {strides = array<i32>} : memref<1x8x128xf32, #tpu.memory_space<vmem>>, vector<1x8x128xf32>,
    return
  }
  func.func @transform_0(%arg0: i32) -> (i32, i32) {
    %c0_i32 = arith.constant 0 : i32
    %c0_i32_0 = arith.constant 0 : i32
    return %arg0, %c0_i32 : i32, i32
  }
  func.func @transform_1(%arg0: i32) -> (i32, i32) {
    %c0_i32 = arith.constant 0 : i32
    %c0_i32_0 = arith.constant 0 : i32
    return %arg0, %c0_i32 : i32, i32
  }
  func.func @transform_2(%arg0: i32) -> (i32, i32, i32) {
    %c0_i32 = arith.constant 0 : i32
    %c0_i32_0 = arith.constant 0 : i32
    %c0_i32_1 = arith.constant 0 : i32
    return %arg0, %c0_i32, %c0_i32_0 : i32, i32, i32
  }
}

</mosaic_0001>

<llo_original>
// kernel: tpu_custom_call.1
$region0: #{tpu_custom_call.1}
  #allocation0 [shape = 'u32[]', space=smem, size = 0x4, offset = 0x4, fixed_abs, tag = 'smem constant byte address 0x4 - core index']
  #allocation1 [shape = 'u32[72,128]{1,0:T(1,128)}', space=vmem, size = 0x9000, scoped, tag = 'internal scratch']
  %s0 = inlined_call_operand.hbm [shape: f32[32,128], index: 0, kind: input, shape index: {}]
  %s1 = inlined_call_operand.hbm [shape: f32[32,128], index: 1, kind: input, shape index: {}]
  %s2 = inlined_call_operand.hbm [shape: f32[1,8,128], index: 2, kind: output, shape index: {}]
  %s3 = sld [smem:[#allocation0]]
  $region26: #{tpu_custom_call.1} parent=0
    _
  %s5 = ssub.s32 1, %s3
  %s6 = scalar_select 0, %s5, %s3
  $region1: #{tpu_custom_call.1} parent=0
    #allocation2 [shape = 'u8[16384]{0}', space=vmem, size = 0x4000, scoped, tag = 'input window, operand 0, single buffered']
    #allocation3 [shape = 's32[1]{0}', space=sflag, size = 0x4, scoped, tag = 'scoped memory for tpu_custom_call.1']
    #allocation4 [shape = 's32[1]{0}', space=sflag, size = 0x4, scoped, tag = 'scoped memory for tpu_custom_call.1']
    #allocation5 [shape = 'u8[16384]{0}', space=vmem, size = 0x4000, scoped, tag = 'input window, operand 1, single buffered']
    #allocation6 [shape = 's32[1]{0}', space=sflag, size = 0x4, scoped, tag = 'scoped memory for tpu_custom_call.1']
    #allocation7 [shape = 'u8[4096]{0}', space=vmem, size = 0x1000, scoped, tag = 'output window, operand 0, single buffered']
    %7 = vsyncpa [#allocation3], 0
    %8 = vsyncpa [#allocation6], 0
    %9 = vsyncpa [#allocation4], 0
    // Predicated region
    $region2: #{tpu_custom_call.1} parent=1 // pred_check
      _
    $region3: #{tpu_custom_call.1} parent=1 // pred_check_branch
      %11 = sbr.rel (0) target = $region5
    $region4: #{tpu_custom_call.1} parent=1 // pred_region
      %13 = vsyncadd [#allocation3], 0
      %s14 = sshll.u32 %s0, 4
      %s15 = int_to_ptr.hbm [resolvable:$true] %s14
      %s16 = sshll.u32 [#allocation2], 4
      %s17 = int_to_ptr.vmem [resolvable:$true] %s16
      %22 = dma.hbm_to_vmem [thread:$0]  %s15, 512, %s17, [#allocation3], 128, 128, 8
    $region5: #{tpu_custom_call.1} parent=1 // pred_fallthru
      _
    // Predicated region
    $region6: #{tpu_custom_call.1} parent=1 // pred_check
      _
    $region7: #{tpu_custom_call.1} parent=1 // pred_check_branch
      %24 = sbr.rel (0) target = $region9
    $region8: #{tpu_custom_call.1} parent=1 // pred_region
      %26 = vsyncadd [#allocation6], 0
      %s27 = sshll.u32 %s1, 4
      %s28 = int_to_ptr.hbm [resolvable:$true] %s27
      %s29 = sshll.u32 [#allocation5], 4
      %s30 = int_to_ptr.vmem [resolvable:$true] %s29
      %35 = dma.hbm_to_vmem [thread:$0]  %s28, 512, %s30, [#allocation6], 128, 128, 8
    $region9: #{tpu_custom_call.1} parent=1 // pred_fallthru
      _
    // Predicated region
    $region10: #{tpu_custom_call.1} parent=1 // pred_check
      _
    $region11: #{tpu_custom_call.1} parent=1 // pred_check_branch
      %37 = sbr.rel (0) target = $region13
    $region12: #{tpu_custom_call.1} parent=1 // pred_region
      %39 = dma.done [#allocation3], 512
    $region13: #{tpu_custom_call.1} parent=1 // pred_fallthru
      _
    // Predicated region
    $region14: #{tpu_custom_call.1} parent=1 // pred_check
      _
    $region15: #{tpu_custom_call.1} parent=1 // pred_check_branch
      %41 = sbr.rel (0) target = $region17
    $region16: #{tpu_custom_call.1} parent=1 // pred_region
      %43 = dma.done [#allocation6], 512
    $region17: #{tpu_custom_call.1} parent=1 // pred_fallthru
      _
    %v44 = vld [vmem:[#allocation5] sm:$0xff]
    %v45 = vld [vmem:[#allocation5 + $0x8] sm:$0xff]
    %v46 = vld [vmem:[#allocation5 + $0x10] sm:$0xff]
    %v47 = vld [vmem:[#allocation5 + $0x18] sm:$0xff]
    %v48 = vmax.f32 %v44, 1e-06
    %v49 = vmax.f32 %v45, 1e-06
    %v50 = vmax.f32 %v46, 1e-06
    %v51 = vmax.f32 %v47, 1e-06
    %v52 = vmin.f32 %v48, 0.999999
    %v53 = vmin.f32 %v49, 0.999999
    %v54 = vmin.f32 %v50, 0.999999
    %v55 = vmin.f32 %v51, 0.999999
    %v56 = vld [vmem:[#allocation2] sm:$0xff]
    %v57 = vld [vmem:[#allocation2 + $0x8] sm:$0xff]
    %v58 = vld [vmem:[#allocation2 + $0x10] sm:$0xff]
    %v59 = vld [vmem:[#allocation2 + $0x18] sm:$0xff]
    %v60 = vsub.f32 1.0, %v52
    %v61 = vsub.f32 1.0, %v53
    %v62 = vsub.f32 1.0, %v54
    %v63 = vsub.f32 1.0, %v55
    %v64 = vmul.f32 %v56, %v60
    %v65 = vmul.f32 %v57, %v61
    %v66 = vmul.f32 %v58, %v62
    %v67 = vmul.f32 %v59, %v63
    %v68 = vadd.f32 %v64, %v65
    %v69 = vadd.f32 %v68, %v66
    %v70 = vadd.f32 %v69, %v67
    %71 = vst [vmem:[#allocation7] sm:$0xff] %v70
    // Predicated region
    $region18: #{tpu_custom_call.1} parent=1 // pred_check
      _
    $region19: #{tpu_custom_call.1} parent=1 // pred_check_branch
      %73 = sbr.rel (0) target = $region21
    $region20: #{tpu_custom_call.1} parent=1 // pred_region
      %75 = vsyncadd [#allocation4], 0
      %s77 = sshll.u32 [#allocation7], 4
      %s78 = int_to_ptr.vmem [resolvable:$true] %s77
      %s79 = sshll.u32 %s2, 4
      %s80 = int_to_ptr.hbm [resolvable:$true] %s79
      %82 = dma.vmem_to_hbm [thread:$0]  %s78, 128, %s80, [#allocation4]
    $region21: #{tpu_custom_call.1} parent=1 // pred_fallthru
      _
    // Predicated region
    $region22: #{tpu_custom_call.1} parent=1 // pred_check
      _
    $region23: #{tpu_custom_call.1} parent=1 // pred_check_branch
      %84 = sbr.rel (0) target = $region25
    $region24: #{tpu_custom_call.1} parent=1 // pred_region
      %86 = dma.done [#allocation4], 128
    $region25: #{tpu_custom_call.1} parent=1 // pred_fallthru
      _
    %87 = vsyncpa [#allocation3], 1
    %88 = vsyncpa [#allocation6], 1
    %89 = vsyncpa [#allocation4], 1

</llo_original>
